<compile_context>
chip_gen: v5e
topology: v5e:2x2
jax: 0.10.0
libtpu: 0.0.40
codegen_flags: <defaults>
</compile_context>

<pallas_src>
import jax
import jax.numpy as jnp
from jax.experimental import pallas as pl
from jax.experimental.pallas import tpu as pltpu

STATE_SIZE = 4    # CartPole-v0 observation_space.shape[0]
ACTION_SIZE = 2   # CartPole-v0 action_space.n
H1, H2, H3 = 32, 64, 32
HMAX = 64         # max layer width -> padded slab size


def _round_up(n, m):
    return ((n + m - 1) // m) * m


def actor_kernel(x_ref, w_ref, b_ref, out_ref):
    # x_ref:   (STATE_SIZE, TB)   batch on lanes
    # w_ref:   (4, HMAX, HMAX)    zero-padded; layer i weight is [i, :out, :in]
    # b_ref:   (HMAX, 4)          zero-padded; layer i bias is  [:out, i]
    # out_ref: (ACTION_SIZE, TB)
    x = x_ref[...]

    # NOTE: k=4 / m<=64 contractions underfill the MXU; inherent to the
    # 4->32->64->32->2 shapes and accepted knowingly.
    h = jnp.maximum(
        jnp.dot(w_ref[0, :H1, :STATE_SIZE], x,
                preferred_element_type=jnp.float32) + b_ref[:H1, 0:1], 0.0)
    h = jnp.maximum(
        jnp.dot(w_ref[1, :H2, :H1], h,
                preferred_element_type=jnp.float32) + b_ref[:H2, 1:2], 0.0)
    h = jnp.maximum(
        jnp.dot(w_ref[2, :H3, :H2], h,
                preferred_element_type=jnp.float32) + b_ref[:H3, 2:3], 0.0)

    # Layer 4 collapsed to the logit difference d = logit1 - logit0.
    d = jnp.dot(w_ref[3, 0:1, :H3], h,
                preferred_element_type=jnp.float32) + b_ref[0:1, 3:4]   # (1, TB)

    # 2-class softmax via sigmoid; p0 computed as sigmoid(-d) (NOT 1 - p1) so
    # tiny probabilities stay representable for downstream log-prob use.
    out_ref[0:1, :] = 1.0 / (1.0 + jnp.exp(d))      # p0 = sigmoid(-d)
    out_ref[1:2, :] = 1.0 / (1.0 + jnp.exp(-d))     # p1 = sigmoid(d)


def pack_params(params):
    """Pack (in,out)-weights / (1,out)-biases into zero-padded slabs.

    Returns:
      w_slab: (4, HMAX, HMAX) f32; layer i stored transposed as (out, in).
              Layer 4 stored as a single logit-difference row.
      b_slab: (HMAX, 4) f32; column i is layer i's bias (col 3 = bias diff).
    Done once outside the kernel (layout plumbing).
    """
    w1, b1, w2, b2, w3, b3, w4, b4 = params
    w_slab = jnp.zeros((4, HMAX, HMAX), jnp.float32)
    b_slab = jnp.zeros((HMAX, 4), jnp.float32)
    w_slab = w_slab.at[0, :H1, :STATE_SIZE].set(w1.T)
    w_slab = w_slab.at[1, :H2, :H1].set(w2.T)
    w_slab = w_slab.at[2, :H3, :H2].set(w3.T)
    w_slab = w_slab.at[3, 0, :H3].set(w4[:, 1] - w4[:, 0])
    b_slab = b_slab.at[:H1, 0].set(b1[0])
    b_slab = b_slab.at[:H2, 1].set(b2[0])
    b_slab = b_slab.at[:H3, 2].set(b3[0])
    b_slab = b_slab.at[0, 3].set(b4[0, 1] - b4[0, 0])
    return w_slab, b_slab


def actor_probs_fm(x_fm, w_slab, b_slab, *, block_b=8192):
    """Feature-major entry point (no wrapper transposes / pads).

    x_fm: (STATE_SIZE, B) f32  ->  probs: (ACTION_SIZE, B) f32.
    """
    S, B = x_fm.shape
    assert S == STATE_SIZE

    # Lane-aligned tile; guarantee >= 2 grid steps once the batch is big
    # enough so v7x's second TensorCore gets work ("parallel" axis).
    block_b = _round_up(max(block_b, 128), 128)
    TB = min(block_b, max(128, _round_up(pl.cdiv(B, 2), 128)))
    grid = (pl.cdiv(B, TB),)   # ragged last block handled by Pallas

    return pl.pallas_call(
        actor_kernel,
        out_shape=jax.ShapeDtypeStruct((ACTION_SIZE, B), jnp.float32),
        grid=grid,
        in_specs=[
            pl.BlockSpec((STATE_SIZE, TB), lambda i: (0, i)),     # x tile per step
            pl.BlockSpec(w_slab.shape, lambda i: (0, 0, 0)),      # weights: constant
            pl.BlockSpec(b_slab.shape, lambda i: (0, 0)),         # biases:  constant
        ],
        out_specs=pl.BlockSpec((ACTION_SIZE, TB), lambda i: (0, i)),
        compiler_params=pltpu.CompilerParams(
            dimension_semantics=("parallel",),      # megacore sharding on v7x
            vmem_limit_bytes=32 * 1024 * 1024,      # safe on v5e/v6e/v7x for TB<=16K
        ),
    )(x_fm, w_slab, b_slab)


def actor_forward(state, w_slab, b_slab, *, block_b=8192):
    """Compat wrapper: state (B, STATE_SIZE) -> probs (B, ACTION_SIZE).

    Prefer `actor_probs_fm` when the producer/consumer can work feature-major;
    the two transposes here are extra XLA passes over HBM.
    """
    x_fm = jnp.asarray(state, jnp.float32).T
    return actor_probs_fm(x_fm, w_slab, b_slab, block_b=block_b).T


def init_params(key):
    """PyTorch nn.Linear default init: U[-1/sqrt(fan_in), 1/sqrt(fan_in)].
    Weights stored as (in_features, out_features), biases as (1, out_features)."""
    dims = [(STATE_SIZE, H1), (H1, H2), (H2, H3), (H3, ACTION_SIZE)]
    params = []
    keys = jax.random.split(key, 2 * len(dims))
    for i, (fin, fout) in enumerate(dims):
        bound = 1.0 / jnp.sqrt(jnp.float32(fin))
        w = jax.random.uniform(keys[2 * i], (fin, fout), jnp.float32, -bound, bound)
        b = jax.random.uniform(keys[2 * i + 1], (1, fout), jnp.float32, -bound, bound)
        params += [w, b]
    return tuple(params)


def reference_forward(state, params):
    w1, b1, w2, b2, w3, b3, w4, b4 = params
    h = jax.nn.relu(state @ w1 + b1)
    h = jax.nn.relu(h @ w2 + b2)
    h = jax.nn.relu(h @ w3 + b3)
    logits = h @ w4 + b4
    return jax.nn.softmax(logits, axis=-1)


if __name__ == "__main__":
    key = jax.random.PRNGKey(0)
    pkey, xkey, xkey2 = jax.random.split(key, 3)
    params = init_params(pkey)
    w_slab, b_slab = pack_params(params)

    # Small-shape run (batch=2, state=4) consistent with the module.
    B = 2
    state = jax.random.normal(xkey, (B, STATE_SIZE), jnp.float32)
    probs = jax.block_until_ready(actor_forward(state, w_slab, b_slab))
    ref = reference_forward(state, params)
    assert probs.shape == (B, ACTION_SIZE)
    assert jnp.allclose(probs, ref, atol=1e-5, rtol=1e-5)
    assert jnp.allclose(jnp.sum(probs, axis=-1), 1.0, atol=1e-5)

    # Feature-major path, non-aligned batch -> multi-step grid with a ragged
    # last block (exercises the no-pad path and >=2-step megacore split).
    B2 = 260
    state2 = jax.random.normal(xkey2, (B2, STATE_SIZE), jnp.float32)
    probs2_fm = jax.block_until_ready(actor_probs_fm(state2.T, w_slab, b_slab))
    ref2 = reference_forward(state2, params)
    assert probs2_fm.shape == (ACTION_SIZE, B2)
    assert jnp.allclose(probs2_fm.T, ref2, atol=1e-5, rtol=1e-5)
    assert jnp.allclose(jnp.sum(probs2_fm, axis=0), 1.0, atol=1e-5)

    print("KERNEL_OK")
</pallas_src>

<mosaic_0001>
module attributes {stable_mosaic.version = 11 : i64} {
  func.func @actor_kernel(%arg0: i32, %arg1: memref<4x128xf32, #tpu.memory_space<vmem>>, %arg2: memref<4x64x64xf32, #tpu.memory_space<vmem>>, %arg3: memref<64x4xf32, #tpu.memory_space<vmem>>, %arg4: memref<2x128xf32, #tpu.memory_space<vmem>>) attributes {dimension_semantics = [#tpu.dimension_semantics<parallel>], iteration_bounds = array<i64: 1>, scalar_prefetch = 0 : i64, scratch_operands = 0 : i64, tpu.core_type = #tpu.core_type<tc>, window_params = [{transform_indices = @transform_0, window_bounds = array<i64: 4, 128>}, {pipeline_mode = #tpu.pipeline_mode<synchronous>, transform_indices = @transform_1, window_bounds = array<i64: 4, 64, 64>}, {pipeline_mode = #tpu.pipeline_mode<synchronous>, transform_indices = @transform_2, window_bounds = array<i64: 64, 4>}, {transform_indices = @transform_3, window_bounds = array<i64: 2, 128>}]} {
    %c0 = arith.constant 0 : index
    %c0_0 = arith.constant 0 : index
    %0 = vector.load %arg1[%c0, %c0_0] : memref<4x128xf32, #tpu.memory_space<vmem>>, vector<4x128xf32>
    %c0_1 = arith.constant 0 : index
    %c0_2 = arith.constant 0 : index
    %c0_3 = arith.constant 0 : index
    %1 = vector.load %arg2[%c0_1, %c0_2, %c0_3] : memref<4x64x64xf32, #tpu.memory_space<vmem>>, vector<1x32x4xf32>
    %2 = vector.shape_cast %1 : vector<1x32x4xf32> to vector<32x4xf32>
    %cst = arith.constant dense<0.000000e+00> : vector<32x128xf32>
    %3 = tpu.matmul %2, %0, %cst {dimension_numbers = #tpu.dot_dimension_numbers<[1], [0], [0], [1], [0, 0, 1, 1], [], []>} : vector<32x4xf32>, vector<4x128xf32>, vector<32x128xf32> -> vector<32x128xf32>
    %c0_4 = arith.constant 0 : index
    %c0_5 = arith.constant 0 : index
    %4 = vector.load %arg3[%c0_4, %c0_5] : memref<64x4xf32, #tpu.memory_space<vmem>>, vector<32x1xf32>
    %5 = vector.broadcast %4 : vector<32x1xf32> to vector<32x128xf32>
    %6 = arith.addf %3, %5 : vector<32x128xf32>
    %cst_6 = arith.constant 0.000000e+00 : f32
    %7 = vector.broadcast %cst_6 : f32 to vector<32x128xf32>
    %8 = arith.maximumf %6, %7 : vector<32x128xf32>
    %c1 = arith.constant 1 : index
    %c0_7 = arith.constant 0 : index
    %c0_8 = arith.constant 0 : index
    %9 = vector.load %arg2[%c1, %c0_7, %c0_8] : memref<4x64x64xf32, #tpu.memory_space<vmem>>, vector<1x64x32xf32>
    %10 = vector.shape_cast %9 : vector<1x64x32xf32> to vector<64x32xf32>
    %cst_9 = arith.constant dense<0.000000e+00> : vector<64x128xf32>
    %11 = tpu.matmul %10, %8, %cst_9 {dimension_numbers = #tpu.dot_dimension_numbers<[1], [0], [0], [1], [0, 0, 1, 1], [], []>} : vector<64x32xf32>, vector<32x128xf32>, vector<64x128xf32> -> vector<64x128xf32>
    %c0_10 = arith.constant 0 : index
    %c1_11 = arith.constant 1 : index
    %12 = vector.load %arg3[%c0_10, %c1_11] : memref<64x4xf32, #tpu.memory_space<vmem>>, vector<64x1xf32>
    %13 = vector.broadcast %12 : vector<64x1xf32> to vector<64x128xf32>
    %14 = arith.addf %11, %13 : vector<64x128xf32>
    %cst_12 = arith.constant 0.000000e+00 : f32
    %15 = vector.broadcast %cst_12 : f32 to vector<64x128xf32>
    %16 = arith.maximumf %14, %15 : vector<64x128xf32>
    %c2 = arith.constant 2 : index
    %c0_13 = arith.constant 0 : index
    %c0_14 = arith.constant 0 : index
    %17 = vector.load %arg2[%c2, %c0_13, %c0_14] : memref<4x64x64xf32, #tpu.memory_space<vmem>>, vector<1x32x64xf32>
    %18 = vector.shape_cast %17 : vector<1x32x64xf32> to vector<32x64xf32>
    %cst_15 = arith.constant dense<0.000000e+00> : vector<32x128xf32>
    %19 = tpu.matmul %18, %16, %cst_15 {dimension_numbers = #tpu.dot_dimension_numbers<[1], [0], [0], [1], [0, 0, 1, 1], [], []>} : vector<32x64xf32>, vector<64x128xf32>, vector<32x128xf32> -> vector<32x128xf32>
    %c0_16 = arith.constant 0 : index
    %c2_17 = arith.constant 2 : index
    %20 = vector.load %arg3[%c0_16, %c2_17] : memref<64x4xf32, #tpu.memory_space<vmem>>, vector<32x1xf32>
    %21 = vector.broadcast %20 : vector<32x1xf32> to vector<32x128xf32>
    %22 = arith.addf %19, %21 : vector<32x128xf32>
    %cst_18 = arith.constant 0.000000e+00 : f32
    %23 = vector.broadcast %cst_18 : f32 to vector<32x128xf32>
    %24 = arith.maximumf %22, %23 : vector<32x128xf32>
    %c3 = arith.constant 3 : index
    %c0_19 = arith.constant 0 : index
    %c0_20 = arith.constant 0 : index
    %25 = vector.load %arg2[%c3, %c0_19, %c0_20] : memref<4x64x64xf32, #tpu.memory_space<vmem>>, vector<1x1x32xf32>
    %26 = vector.shape_cast %25 : vector<1x1x32xf32> to vector<1x32xf32>
    %cst_21 = arith.constant dense<0.000000e+00> : vector<1x128xf32>
    %27 = tpu.matmul %26, %24, %cst_21 {dimension_numbers = #tpu.dot_dimension_numbers<[1], [0], [0], [1], [0, 0, 1, 1], [], []>} : vector<1x32xf32>, vector<32x128xf32>, vector<1x128xf32> -> vector<1x128xf32>
    %c0_22 = arith.constant 0 : index
    %c3_23 = arith.constant 3 : index
    %28 = vector.load %arg3[%c0_22, %c3_23] : memref<64x4xf32, #tpu.memory_space<vmem>>, vector<1x1xf32>
    %29 = vector.broadcast %28 : vector<1x1xf32> to vector<1x128xf32>
    %30 = arith.addf %27, %29 : vector<1x128xf32>
    %31 = math.exp %30 : vector<1x128xf32>
    %cst_24 = arith.constant 1.000000e+00 : f32
    %32 = vector.broadcast %cst_24 : f32 to vector<1x128xf32>
    %33 = arith.addf %32, %31 : vector<1x128xf32>
    %cst_25 = arith.constant 1.000000e+00 : f32
    %34 = vector.broadcast %cst_25 : f32 to vector<1x128xf32>
    %35 = arith.divf %34, %33 : vector<1x128xf32>
    %c0_26 = arith.constant 0 : index
    %c0_27 = arith.constant 0 : index
    %36 = vector.load %arg4[%c0_26, %c0_27] : memref<2x128xf32, #tpu.memory_space<vmem>>, vector<1x128xf32>
    tpu.vector_store %arg4[%c0_26, %c0_27], %35 {strides = array<i32>} : memref<2x128xf32, #tpu.memory_space<vmem>>, vector<1x128xf32>,
    %cst_28 = arith.constant 0.000000e+00 : f32
    %37 = vector.broadcast %cst_28 : f32 to vector<1x128xf32>
    %38 = arith.subf %37, %30 : vector<1x128xf32>
    %39 = math.exp %38 : vector<1x128xf32>
    %cst_29 = arith.constant 1.000000e+00 : f32
    %40 = vector.broadcast %cst_29 : f32 to vector<1x128xf32>
    %41 = arith.addf %40, %39 : vector<1x128xf32>
    %cst_30 = arith.constant 1.000000e+00 : f32
    %42 = vector.broadcast %cst_30 : f32 to vector<1x128xf32>
    %43 = arith.divf %42, %41 : vector<1x128xf32>
    %c1_31 = arith.constant 1 : index
    %c0_32 = arith.constant 0 : index
    %44 = vector.load %arg4[%c1_31, %c0_32] : memref<2x128xf32, #tpu.memory_space<vmem>>, vector<1x128xf32>
    tpu.vector_store %arg4[%c1_31, %c0_32], %43 {strides = array<i32>} : memref<2x128xf32, #tpu.memory_space<vmem>>, vector<1x128xf32>,
    return
  }
  func.func @transform_0(%arg0: i32) -> (i32, i32) {
    %c0_i32 = arith.constant 0 : i32
    %c0_i32_0 = arith.constant 0 : i32
    return %c0_i32, %arg0 : i32, i32
  }
  func.func @transform_1(%arg0: i32) -> (i32, i32, i32) {
    %c0_i32 = arith.constant 0 : i32
    %c0_i32_0 = arith.constant 0 : i32
    %c0_i32_1 = arith.constant 0 : i32
    %c0_i32_2 = arith.constant 0 : i32
    return %c0_i32, %c0_i32_0, %c0_i32_1 : i32, i32, i32
  }
  func.func @transform_2(%arg0: i32) -> (i32, i32) {
    %c0_i32 = arith.constant 0 : i32
    %c0_i32_0 = arith.constant 0 : i32
    %c0_i32_1 = arith.constant 0 : i32
    return %c0_i32, %c0_i32_0 : i32, i32
  }
  func.func @transform_3(%arg0: i32) -> (i32, i32) {
    %c0_i32 = arith.constant 0 : i32
    %c0_i32_0 = arith.constant 0 : i32
    return %c0_i32, %arg0 : i32, i32
  }
}

</mosaic_0001>

<llo_original>
// kernel: tpu_custom_call.1
$region0: #{tpu_custom_call.1}
  #allocation0 [shape = 'u32[]', space=smem, size = 0x4, offset = 0x4, fixed_abs, tag = 'smem constant byte address 0x4 - core index']
  #allocation1 [shape = 'u32[72,128]{1,0:T(1,128)}', space=vmem, size = 0x9000, scoped, tag = 'internal scratch']
  %s0 = inlined_call_operand.vmem [shape: f32[4,2], index: 0, kind: input, shape index: {}]
  %s1 = inlined_call_operand.hbm [shape: f32[4,64,64], index: 1, kind: input, shape index: {}]
  %s2 = inlined_call_operand.vmem [shape: f32[64,4], index: 2, kind: input, shape index: {}]
  %s3 = inlined_call_operand.hbm [shape: f32[2,2], index: 3, kind: output, shape index: {}]
  %s4 = sld [smem:[#allocation0]]
  $region26: #{tpu_custom_call.1} parent=0
    _
  %s6 = ssub.s32 1, %s4
  %s7 = scalar_select 0, %s6, %s4
  $region1: #{tpu_custom_call.1} parent=0
    #allocation2 [shape = 'u8[131072]{0}', space=vmem, size = 0x20000, scoped, tag = 'input window, operand 1, single buffered']
    #allocation3 [shape = 's32[1]{0}', space=sflag, size = 0x4, scoped, tag = 'scoped memory for tpu_custom_call.1']
    #allocation4 [shape = 's32[1]{0}', space=sflag, size = 0x4, scoped, tag = 'scoped memory for tpu_custom_call.1']
    #allocation5 [shape = 'u8[1024]{0}', space=vmem, size = 0x400, scoped, tag = 'output window, operand 0, single buffered']
    %8 = vsyncpa [#allocation3], 0
    %9 = vsyncpa [#allocation4], 0
    // Predicated region
    $region2: #{tpu_custom_call.1} parent=1 // pred_check
      _
    $region3: #{tpu_custom_call.1} parent=1 // pred_check_branch
      %11 = sbr.rel (0) target = $region5
    $region4: #{tpu_custom_call.1} parent=1 // pred_region
      _
    $region5: #{tpu_custom_call.1} parent=1 // pred_fallthru
      _
    // Predicated region
    $region6: #{tpu_custom_call.1} parent=1 // pred_check
      _
    $region7: #{tpu_custom_call.1} parent=1 // pred_check_branch
      %13 = sbr.rel (0) target = $region9
    $region8: #{tpu_custom_call.1} parent=1 // pred_region
      %15 = vsyncadd [#allocation3], 0
      %s16 = sshll.u32 %s1, 4
      %s17 = int_to_ptr.hbm [resolvable:$true] %s16
      %s18 = sshll.u32 [#allocation2], 4
      %s19 = int_to_ptr.vmem [resolvable:$true] %s18
      %24 = dma.hbm_to_vmem [thread:$0]  %s17, 4096, %s19, [#allocation3], 128, 128, 8
    $region9: #{tpu_custom_call.1} parent=1 // pred_fallthru
      _
    // Predicated region
    $region10: #{tpu_custom_call.1} parent=1 // pred_check
      _
    $region11: #{tpu_custom_call.1} parent=1 // pred_check_branch
      %26 = sbr.rel (0) target = $region13
    $region12: #{tpu_custom_call.1} parent=1 // pred_region
      _
    $region13: #{tpu_custom_call.1} parent=1 // pred_fallthru
      _
    // Predicated region
    $region14: #{tpu_custom_call.1} parent=1 // pred_check
      _
    $region15: #{tpu_custom_call.1} parent=1 // pred_check_branch
      %28 = sbr.rel (0) target = $region17
    $region16: #{tpu_custom_call.1} parent=1 // pred_region
      %30 = dma.done [#allocation3], 4096
    $region17: #{tpu_custom_call.1} parent=1 // pred_fallthru
      _
    %v31 = vld [vmem:[%s0] sm:$0xf]
    %v32 = vld [vmem:[#allocation2] sm:$0xff]
    %v33 = vld [vmem:[#allocation2 + $0x8] sm:$0xff]
    %v34 = vld [vmem:[#allocation2 + $0x10] sm:$0xff]
    %v35 = vld [vmem:[#allocation2 + $0x18] sm:$0xff]
    %v36 = vld [vmem:[%s2] sm:$0xff]
    %v37 = vld [vmem:[%s2 + $0x8] sm:$0xff]
    %v38 = vld [vmem:[%s2 + $0x10] sm:$0xff]
    %v39 = vld [vmem:[%s2 + $0x18] sm:$0xff]
    %41 = vset.pattern.permute.xlu0 0
    %42 = vperm.xlu0 %41, %v36
    %v43 = vpop.permute.xlu0 %42
    %46 = vset.pattern.permute.xlu0 0
    %47 = vperm.xlu0 %46, %v37
    %v48 = vpop.permute.xlu0 %47
    %51 = vset.pattern.permute.xlu0 0
    %52 = vperm.xlu0 %51, %v38
    %v53 = vpop.permute.xlu0 %52
    %56 = vset.pattern.permute.xlu0 0
    %57 = vperm.xlu0 %56, %v39
    %v58 = vpop.permute.xlu0 %57
    %vm60 = vcmask 31744
    %v62 = vsel %vm60, %v32, 0
    %v65 = vsel %vm60, %v33, 0
    %v68 = vsel %vm60, %v34, 0
    %v71 = vsel %vm60, %v35, 0
    %vm73 = vcmask 1043456
    %v75 = vsel %vm73, %v31, 0
    %77 = vmatpush.msra.mxu0 0.0
    %78 = vmatpush.msra.mxu0 0.0
    %79 = vmatpush.msra.mxu0 0.0
    %80 = vmatpush.msra.mxu0 0.0
    %81 = vmatpush.msra.mxu0 0.0
    %82 = vmatpush.msra.mxu0 0.0
    %83 = vmatpush.msra.mxu0 0.0
    %84 = vmatpush.msra.mxu0 0.0
    %85 = vmatpush.msra.mxu0 0.0
    %86 = vmatpush.msra.mxu0 0.0
    %87 = vmatpush.msra.mxu0 0.0
    %88 = vmatpush.msra.mxu0 0.0
    %89 = vmatpush.msra.mxu0 0.0
    %90 = vmatpush.msra.mxu0 0.0
    %91 = vmatpush.msra.mxu0 0.0
    %92 = vmatpush.msra.mxu0 %v75
    %93 = vmatmul.f32.gmra.mxu0 %v62
    %v94 = vpop.f32.mrf.mxu0
    %v95 = vadd.f32 %v43, %v94
    %96 = vmatmul.f32.gmra.mxu0 %v65
    %v97 = vpop.f32.mrf.mxu0
    %v98 = vadd.f32 %v48, %v97
    %99 = vmatmul.f32.gmra.mxu0 %v68
    %v100 = vpop.f32.mrf.mxu0
    %v101 = vadd.f32 %v53, %v100
    %102 = vmatmul.f32.gmra.mxu0 %v71
    %v103 = vpop.f32.mrf.mxu0
    %v104 = vadd.f32 %v58, %v103
    %105 = vdwg.mxu0
    %v106 = vmax.f32 %v95, 0.0
    %v107 = vmax.f32 %v98, 0.0
    %v108 = vmax.f32 %v101, 0.0
    %v109 = vmax.f32 %v104, 0.0
    %s110 = scalar_lea.vmem [#allocation2], 64
    %v111 = vld [vmem:[%s110] sm:$0xff]
    %v112 = vld [vmem:[%s110 + $0x8] sm:$0xff]
    %v113 = vld [vmem:[%s110 + $0x10] sm:$0xff]
    %v114 = vld [vmem:[%s110 + $0x18] sm:$0xff]
    %v115 = vld [vmem:[%s110 + $0x20] sm:$0xff]
    %v116 = vld [vmem:[%s110 + $0x28] sm:$0xff]
    %v117 = vld [vmem:[%s110 + $0x30] sm:$0xff]
    %v118 = vld [vmem:[%s110 + $0x38] sm:$0xff]
    %v119 = vld [vmem:[%s2] sm:$0xff]
    %v120 = vld [vmem:[%s2 + $0x8] sm:$0xff]
    %v121 = vld [vmem:[%s2 + $0x10] sm:$0xff]
    %v122 = vld [vmem:[%s2 + $0x18] sm:$0xff]
    %v123 = vld [vmem:[%s2 + $0x20] sm:$0xff]
    %v124 = vld [vmem:[%s2 + $0x28] sm:$0xff]
    %v125 = vld [vmem:[%s2 + $0x30] sm:$0xff]
    %v126 = vld [vmem:[%s2 + $0x38] sm:$0xff]
    %128 = vset.pattern.permute.xlu0 1
    %129 = vperm.xlu0 %128, %v119
    %v130 = vpop.permute.xlu0 %129
    %133 = vset.pattern.permute.xlu0 1
    %134 = vperm.xlu0 %133, %v120
    %v135 = vpop.permute.xlu0 %134
    %138 = vset.pattern.permute.xlu0 1
    %139 = vperm.xlu0 %138, %v121
    %v140 = vpop.permute.xlu0 %139
    %143 = vset.pattern.permute.xlu0 1
    %144 = vperm.xlu0 %143, %v122
    %v145 = vpop.permute.xlu0 %144
    %148 = vset.pattern.permute.xlu0 1
    %149 = vperm.xlu0 %148, %v123
    %v150 = vpop.permute.xlu0 %149
    %153 = vset.pattern.permute.xlu0 1
    %154 = vperm.xlu0 %153, %v124
    %v155 = vpop.permute.xlu0 %154
    %158 = vset.pattern.permute.xlu0 1
    %159 = vperm.xlu0 %158, %v125
    %v160 = vpop.permute.xlu0 %159
    %163 = vset.pattern.permute.xlu0 1
    %164 = vperm.xlu0 %163, %v126
    %v165 = vpop.permute.xlu0 %164
    %vm167 = vcmask 261120
    %v169 = vsel %vm167, %v111, 0
    %v172 = vsel %vm167, %v112, 0
    %v175 = vsel %vm167, %v113, 0
    %v178 = vsel %vm167, %v114, 0
    %v181 = vsel %vm167, %v115, 0
    %v184 = vsel %vm167, %v116, 0
    %v187 = vsel %vm167, %v117, 0
    %v190 = vsel %vm167, %v118, 0
    %192 = vmatpush.msra.mxu0 0.0
    %193 = vmatpush.msra.mxu0 0.0
    %194 = vmatpush.msra.mxu0 0.0
    %195 = vmatpush.msra.mxu0 0.0
    %196 = vmatpush.msra.mxu0 0.0
    %197 = vmatpush.msra.mxu0 0.0
    %198 = vmatpush.msra.mxu0 0.0
    %199 = vmatpush.msra.mxu0 0.0
    %200 = vmatpush.msra.mxu0 0.0
    %201 = vmatpush.msra.mxu0 0.0
    %202 = vmatpush.msra.mxu0 0.0
    %203 = vmatpush.msra.mxu0 0.0
    %204 = vmatpush.msra.mxu0 %v109
    %205 = vmatpush.msra.mxu0 %v108
    %206 = vmatpush.msra.mxu0 %v107
    %207 = vmatpush.msra.mxu0 %v106
    %208 = vmatmul.f32.gmra.mxu0 %v169
    %v209 = vpop.f32.mrf.mxu0
    %v210 = vadd.f32 %v130, %v209
    %211 = vmatmul.f32.gmra.mxu0 %v172
    %v212 = vpop.f32.mrf.mxu0
    %v213 = vadd.f32 %v135, %v212
    %214 = vmatmul.f32.gmra.mxu0 %v175
    %v215 = vpop.f32.mrf.mxu0
    %v216 = vadd.f32 %v140, %v215
    %217 = vmatmul.f32.gmra.mxu0 %v178
    %v218 = vpop.f32.mrf.mxu0
    %v219 = vadd.f32 %v145, %v218
    %220 = vmatmul.f32.gmra.mxu0 %v181
    %v221 = vpop.f32.mrf.mxu0
    %v222 = vadd.f32 %v150, %v221
    %223 = vmatmul.f32.gmra.mxu0 %v184
    %v224 = vpop.f32.mrf.mxu0
    %v225 = vadd.f32 %v155, %v224
    %226 = vmatmul.f32.gmra.mxu0 %v187
    %v227 = vpop.f32.mrf.mxu0
    %v228 = vadd.f32 %v160, %v227
    %229 = vmatmul.f32.gmra.mxu0 %v190
    %v230 = vpop.f32.mrf.mxu0
    %v231 = vadd.f32 %v165, %v230
    %232 = vdwg.mxu0
    %v233 = vmax.f32 %v210, 0.0
    %v234 = vmax.f32 %v213, 0.0
    %v235 = vmax.f32 %v216, 0.0
    %v236 = vmax.f32 %v219, 0.0
    %v237 = vmax.f32 %v222, 0.0
    %v238 = vmax.f32 %v225, 0.0
    %v239 = vmax.f32 %v228, 0.0
    %v240 = vmax.f32 %v231, 0.0
    %s241 = scalar_lea.vmem [#allocation2], 128
    %v242 = vld [vmem:[%s241] sm:$0xff]
    %v243 = vld [vmem:[%s241 + $0x8] sm:$0xff]
    %v244 = vld [vmem:[%s241 + $0x10] sm:$0xff]
    %v245 = vld [vmem:[%s241 + $0x18] sm:$0xff]
    %246 = vset.pattern.permute.xlu0 2
    %247 = vperm.xlu0 %246, %v36
    %v248 = vpop.permute.xlu0 %247
    %250 = vset.pattern.permute.xlu0 2
    %251 = vperm.xlu0 %250, %v37
    %v252 = vpop.permute.xlu0 %251
    %254 = vset.pattern.permute.xlu0 2
    %255 = vperm.xlu0 %254, %v38
    %v256 = vpop.permute.xlu0 %255
    %258 = vset.pattern.permute.xlu0 2
    %259 = vperm.xlu0 %258, %v39
    %v260 = vpop.permute.xlu0 %259
    %vm262 = vcmask 523264
    %v264 = vsel %vm262, %v242, 0
    %v267 = vsel %vm262, %v243, 0
    %v270 = vsel %vm262, %v244, 0
    %v273 = vsel %vm262, %v245, 0
    %275 = vmatpush.msra.mxu0 0.0
    %276 = vmatpush.msra.mxu0 0.0
    %277 = vmatpush.msra.mxu0 0.0
    %278 = vmatpush.msra.mxu0 0.0
    %279 = vmatpush.msra.mxu0 0.0
    %280 = vmatpush.msra.mxu0 0.0
    %281 = vmatpush.msra.mxu0 0.0
    %282 = vmatpush.msra.mxu0 0.0
    %283 = vmatpush.msra.mxu0 %v240
    %284 = vmatpush.msra.mxu0 %v239
    %285 = vmatpush.msra.mxu0 %v238
    %286 = vmatpush.msra.mxu0 %v237
    %287 = vmatpush.msra.mxu0 %v236
    %288 = vmatpush.msra.mxu0 %v235
    %289 = vmatpush.msra.mxu0 %v234
    %290 = vmatpush.msra.mxu0 %v233
    %291 = vmatmul.f32.gmra.mxu0 %v264
    %v292 = vpop.f32.mrf.mxu0
    %v293 = vadd.f32 %v248, %v292
    %294 = vmatmul.f32.gmra.mxu0 %v267
    %v295 = vpop.f32.mrf.mxu0
    %v296 = vadd.f32 %v252, %v295
    %297 = vmatmul.f32.gmra.mxu0 %v270
    %v298 = vpop.f32.mrf.mxu0
    %v299 = vadd.f32 %v256, %v298
    %300 = vmatmul.f32.gmra.mxu0 %v273
    %v301 = vpop.f32.mrf.mxu0
    %v302 = vadd.f32 %v260, %v301
    %303 = vdwg.mxu0
    %v304 = vmax.f32 %v293, 0.0
    %v305 = vmax.f32 %v296, 0.0
    %v306 = vmax.f32 %v299, 0.0
    %v307 = vmax.f32 %v302, 0.0
    %s308 = scalar_lea.vmem [#allocation2], 192
    %v309 = vld [vmem:[%s308] sm:$0x1]
    %v310 = vld [vmem:[%s2] sm:$0x1]
    %312 = vset.pattern.permute.xlu0 3
    %313 = vperm.xlu0 %312, %v310
    %v314 = vpop.permute.xlu0 %313
    %v317 = vsel %vm167, %v309, 0
    %319 = vmatpush.msra.mxu0 0.0
    %320 = vmatpush.msra.mxu0 0.0
    %321 = vmatpush.msra.mxu0 0.0
    %322 = vmatpush.msra.mxu0 0.0
    %323 = vmatpush.msra.mxu0 0.0
    %324 = vmatpush.msra.mxu0 0.0
    %325 = vmatpush.msra.mxu0 0.0
    %326 = vmatpush.msra.mxu0 0.0
    %327 = vmatpush.msra.mxu0 0.0
    %328 = vmatpush.msra.mxu0 0.0
    %329 = vmatpush.msra.mxu0 0.0
    %330 = vmatpush.msra.mxu0 0.0
    %331 = vmatpush.msra.mxu0 %v307
    %332 = vmatpush.msra.mxu0 %v306
    %333 = vmatpush.msra.mxu0 %v305
    %334 = vmatpush.msra.mxu0 %v304
    %335 = vmatmul.f32.gmra.mxu0 %v317
    %v336 = vpop.f32.mrf.mxu0
    %v337 = vadd.f32 %v314, %v336
    %338 = vdwg.mxu0
    %v339 = vmul.f32 %v337, 1.442695
    %v340 = vpow.pop %v339
    %v341 = vadd.f32 %v340, 1.0
    %v342 = vrcp.pop %v341
    %v343 = vmul.f32 %v341, %v342
    %v344 = vsub.f32 1.0, %v343
    %v345 = vmul.f32 %v342, %v344
    %v346 = vadd.f32 %v342, %v345
    %vm347 = vweird.f32 %v341
    %vm348 = vweird.f32 %v342
    %vm349 = vmor %vm347, %vm348
    %v350 = vsel %vm349, %v342, %v346
    %v351 = vand.u32 2147483647, %v341
    %vm352 = vcmp.eq.f32.partialorder %v351, 8.507059e+37
    %v353 = vand.u32 %v341, 2147483648
    %v354 = vor.u32 1.1754944e-38, %v353
    %v355 = vsel %vm352, %v354, %v350
    %v356 = vmul.f32 1.0, %v355
    %357 = vst [vmem:[#allocation5] sm:$0x1] %v356
    %v358 = vsub.f32 0.0, %v337
    %v359 = vmul.f32 %v358, 1.442695
    %v360 = vpow.pop %v359
    %v361 = vadd.f32 %v360, 1.0
    %v362 = vrcp.pop %v361
    %v363 = vmul.f32 %v361, %v362
    %v364 = vsub.f32 1.0, %v363
    %v365 = vmul.f32 %v362, %v364
    %v366 = vadd.f32 %v362, %v365
    %vm367 = vweird.f32 %v361
    %vm368 = vweird.f32 %v362
    %vm369 = vmor %vm367, %vm368
    %v370 = vsel %vm369, %v362, %v366
    %v371 = vand.u32 2147483647, %v361
    %vm372 = vcmp.eq.f32.partialorder %v371, 8.507059e+37
    %v373 = vand.u32 %v361, 2147483648
    %v374 = vor.u32 1.1754944e-38, %v373
    %v375 = vsel %vm372, %v374, %v370
    %v376 = vmul.f32 1.0, %v375
    %377 = vst [vmem:[#allocation5 + $0x1] sm:$0x1] %v376
    // Predicated region
    $region18: #{tpu_custom_call.1} parent=1 // pred_check
      _
    $region19: #{tpu_custom_call.1} parent=1 // pred_check_branch
      %379 = sbr.rel (0) target = $region21
    $region20: #{tpu_custom_call.1} parent=1 // pred_region
      %381 = vsyncadd [#allocation4], 0
      %s383 = sshll.u32 [#allocation5], 4
      %s384 = int_to_ptr.vmem [resolvable:$true] %s383
      %s385 = sshll.u32 %s3, 4
      %s386 = int_to_ptr.hbm [resolvable:$true] %s385
      %388 = dma.vmem_to_hbm [thread:$0]  %s384, 32, %s386, [#allocation4]
    $region21: #{tpu_custom_call.1} parent=1 // pred_fallthru
      _
    // Predicated region
    $region22: #{tpu_custom_call.1} parent=1 // pred_check
      _
    $region23: #{tpu_custom_call.1} parent=1 // pred_check_branch
      %390 = sbr.rel (0) target = $region25
    $region24: #{tpu_custom_call.1} parent=1 // pred_region
      %392 = dma.done [#allocation4], 32
    $region25: #{tpu_custom_call.1} parent=1 // pred_fallthru
      _
    %393 = vsyncpa [#allocation3], 1
    %394 = vsyncpa [#allocation4], 1

</llo_original>
